<compile_context>
chip_gen: v5e
topology: v5e:2x2
jax: 0.10.0
libtpu: 0.0.40
codegen_flags: <defaults>
</compile_context>

<pallas_src>
import functools

import jax
import jax.numpy as jnp
from jax.experimental import pallas as pl
from jax.experimental.pallas import tpu as pltpu

_NEAR = 1.0


def _ndc_kernel(params_ref, slab_ref, out_ref):
    # params_ref (SMEM, shape (4,)): [height, width, f_x, f_y]
    h = params_ref[0]
    w = params_ref[1]
    fx = params_ref[2]
    fy = params_ref[3]

    x = slab_ref[...]                         # (8, TN) f32 packed slab
    ox, oy, oz = x[0:1, :], x[1:2, :], x[2:3, :]
    dx, dy, dz = x[3:4, :], x[4:5, :], x[5:6, :]

    # shift origins onto the near plane: t = -(near + o_z) / d_z
    inv_dz = 1.0 / dz                         # reused below -> only 2 divides
    t = -(_NEAR + oz) * inv_dz
    ox_s = ox + t * dx
    oy_s = oy + t * dy
    oz_s = oz + t * dz

    inv_oz = 1.0 / oz_s

    # -1 / (W / (2 f_x)) == -2 f_x / W   (scalar math, once per tile)
    sx = -2.0 * fx / w
    sy = -2.0 * fy / h

    # write output rows directly (no sublane-concat temporary)
    out_ref[0:1, :] = sx * ox_s * inv_oz                      # o0
    out_ref[1:2, :] = sy * oy_s * inv_oz                      # o1
    out_ref[2:3, :] = 1.0 + 2.0 * _NEAR * inv_oz              # o2
    out_ref[3:4, :] = sx * (dx * inv_dz - ox_s * inv_oz)      # d0
    out_ref[4:5, :] = sy * (dy * inv_dz - oy_s * inv_oz)      # d1
    out_ref[5:6, :] = -2.0 * _NEAR * inv_oz                   # d2
    out_ref[6:8, :] = jnp.zeros((2, x.shape[1]), x.dtype)     # pad rows


def _round_up(x, m):
    return ((x + m - 1) // m) * m


@functools.partial(jax.jit, static_argnames=("tile_n",))
def ndc_forward(height, width, f_x, f_y, origins, directions, *, tile_n=8192):
    """NDC mapping.

    Args:
      height, width, f_x, f_y: scalar float32 camera intrinsics.
      origins, directions: (N, 3) float32 ray bundle.
      tile_n: rays per grid step (tunable; rounded to a multiple of 128).
    Returns:
      (origins_ndc (N,3), directions_ndc (N,3), nears (N,1), fars (N,1))
    """
    N = origins.shape[0]
    assert origins.shape == (N, 3) and directions.shape == (N, 3)

    # Big tiles for HBM roofline, but never bigger than the (padded) ray count.
    tile = max(128, min(_round_up(tile_n, 128), _round_up(N, 128)))
    n_pad = _round_up(N, tile)
    pad = n_pad - N

    ori = origins.astype(jnp.float32)
    drt = directions.astype(jnp.float32)
    if pad:
        ori = jnp.pad(ori, ((0, pad), (0, 0)))
        # pad directions with 1.0 so padded rays don't divide by zero
        drt = jnp.pad(drt, ((0, pad), (0, 0)), constant_values=1.0)

    # Single component-major slab (one layout pass each way):
    # rows 0-2 origins, rows 3-5 directions, rows 6-7 pad.
    slab = jnp.concatenate(
        [ori, drt, jnp.zeros((n_pad, 2), jnp.float32)], axis=1).T    # (8, n_pad)

    params = jnp.stack([height, width, f_x, f_y]).astype(jnp.float32)  # (4,)

    grid = (n_pad // tile,)
    blk = pl.BlockSpec((8, tile), lambda i: (0, i))

    out = pl.pallas_call(
        _ndc_kernel,
        out_shape=jax.ShapeDtypeStruct((8, n_pad), jnp.float32),
        grid_spec=pltpu.PrefetchScalarGridSpec(
            num_scalar_prefetch=0,
            grid=grid,
            in_specs=[
                pl.BlockSpec(memory_space=pltpu.SMEM),  # params (4,)
                blk,                                    # packed rays (8, n_pad)
            ],
            out_specs=blk,                              # packed result (8, n_pad)
        ),
        compiler_params=pltpu.CompilerParams(
            # single grid axis is parallel -> shards across both TCs on v7x
            dimension_semantics=("parallel",)),
    )(params, slab)

    out_t = out.T                                       # (n_pad, 8)
    ori_ndc = out_t[:N, 0:3]
    dir_ndc = out_t[:N, 3:6]
    # nears/fars are compile-time constants; no reason to burn HBM stores on them
    nears = jnp.zeros((N, 1), jnp.float32)
    fars = jnp.ones((N, 1), jnp.float32)
    return ori_ndc, dir_ndc, nears, fars


def _ndc_reference(height, width, f_x, f_y, ori, drt):
    near = 1.0
    t = -(near + ori[..., 2:3]) / drt[..., 2:3]
    ori = ori + t * drt
    sx = -1.0 / (width / (2.0 * f_x))
    sy = -1.0 / (height / (2.0 * f_y))
    o0 = sx * ori[..., 0:1] / ori[..., 2:3]
    o1 = sy * ori[..., 1:2] / ori[..., 2:3]
    o2 = 1.0 + 2.0 * near / ori[..., 2:3]
    d0 = sx * (drt[..., 0:1] / drt[..., 2:3] - ori[..., 0:1] / ori[..., 2:3])
    d1 = sy * (drt[..., 1:2] / drt[..., 2:3] - ori[..., 1:2] / ori[..., 2:3])
    d2 = -2.0 * near / ori[..., 2:3]
    return (jnp.concatenate([o0, o1, o2], -1),
            jnp.concatenate([d0, d1, d2], -1),
            jnp.zeros((ori.shape[0], 1), jnp.float32),
            jnp.ones((ori.shape[0], 1), jnp.float32))


if __name__ == "__main__":
    key = jax.random.PRNGKey(0)
    k0, k1 = jax.random.split(key)

    N = 200  # deliberately NOT a multiple of 128: exercises the padding path

    # deterministic camera intrinsics (the module's forward takes these as tensors)
    height = jnp.asarray(16.0, jnp.float32)
    width = jnp.asarray(16.0, jnp.float32)
    f_x = jnp.asarray(20.0, jnp.float32)
    f_y = jnp.asarray(20.0, jnp.float32)

    origins = jax.random.normal(k0, (N, 3), jnp.float32) * 0.5
    directions = jax.random.normal(k1, (N, 3), jnp.float32)
    # keep d_z away from zero (forward-facing rays), as NDC assumes
    dz = directions[:, 2:3]
    dz = jnp.where(jnp.abs(dz) < 0.2, jnp.sign(dz) * 0.2 + (dz == 0) * 0.2, dz)
    directions = jnp.concatenate([directions[:, 0:2], -jnp.abs(dz)], axis=-1)

    ori_ndc, dir_ndc, nears, fars = ndc_forward(
        height, width, f_x, f_y, origins, directions)
    jax.block_until_ready((ori_ndc, dir_ndc, nears, fars))

    ori_ref, dir_ref, near_ref, far_ref = _ndc_reference(
        height, width, f_x, f_y, origins, directions)

    assert ori_ndc.shape == (N, 3) and dir_ndc.shape == (N, 3)
    assert nears.shape == (N, 1) and fars.shape == (N, 1)
    assert jnp.allclose(ori_ndc, ori_ref, atol=1e-5, rtol=1e-5)
    assert jnp.allclose(dir_ndc, dir_ref, atol=1e-5, rtol=1e-5)
    assert jnp.allclose(nears, near_ref) and jnp.allclose(fars, far_ref)

    print("KERNEL_OK")
</pallas_src>

<mosaic_0001>
module attributes {stable_mosaic.version = 11 : i64} {
  func.func @_ndc_kernel(%arg0: i32, %arg1: memref<4xf32, #tpu.memory_space<smem>>, %arg2: memref<8x256xf32, #tpu.memory_space<vmem>>, %arg3: memref<8x256xf32, #tpu.memory_space<vmem>>) attributes {dimension_semantics = [#tpu.dimension_semantics<parallel>], iteration_bounds = array<i64: 1>, scalar_prefetch = 0 : i64, scratch_operands = 0 : i64, tpu.core_type = #tpu.core_type<tc>, window_params = [{transform_indices = @transform_0, window_bounds = array<i64: 4>}, {transform_indices = @transform_1, window_bounds = array<i64: 8, 256>}, {transform_indices = @transform_2, window_bounds = array<i64: 8, 256>}]} {
    %c0 = arith.constant 0 : index
    %0 = memref.load %arg1[%c0] : memref<4xf32, #tpu.memory_space<smem>>
    %c1 = arith.constant 1 : index
    %1 = memref.load %arg1[%c1] : memref<4xf32, #tpu.memory_space<smem>>
    %c2 = arith.constant 2 : index
    %2 = memref.load %arg1[%c2] : memref<4xf32, #tpu.memory_space<smem>>
    %c3 = arith.constant 3 : index
    %3 = memref.load %arg1[%c3] : memref<4xf32, #tpu.memory_space<smem>>
    %c0_0 = arith.constant 0 : index
    %c0_1 = arith.constant 0 : index
    %4 = vector.load %arg2[%c0_0, %c0_1] : memref<8x256xf32, #tpu.memory_space<vmem>>, vector<8x256xf32>
    %5 = vector.extract_strided_slice %4 {offsets = [0, 0], sizes = [1, 256], strides = [1, 1]} : vector<8x256xf32> to vector<1x256xf32>
    %6 = vector.extract_strided_slice %4 {offsets = [1, 0], sizes = [1, 256], strides = [1, 1]} : vector<8x256xf32> to vector<1x256xf32>
    %7 = vector.extract_strided_slice %4 {offsets = [2, 0], sizes = [1, 256], strides = [1, 1]} : vector<8x256xf32> to vector<1x256xf32>
    %8 = vector.extract_strided_slice %4 {offsets = [3, 0], sizes = [1, 256], strides = [1, 1]} : vector<8x256xf32> to vector<1x256xf32>
    %9 = vector.extract_strided_slice %4 {offsets = [4, 0], sizes = [1, 256], strides = [1, 1]} : vector<8x256xf32> to vector<1x256xf32>
    %10 = vector.extract_strided_slice %4 {offsets = [5, 0], sizes = [1, 256], strides = [1, 1]} : vector<8x256xf32> to vector<1x256xf32>
    %cst = arith.constant 1.000000e+00 : f32
    %11 = vector.broadcast %cst : f32 to vector<1x256xf32>
    %12 = arith.divf %11, %10 : vector<1x256xf32>
    %cst_2 = arith.constant 1.000000e+00 : f32
    %13 = vector.broadcast %cst_2 : f32 to vector<1x256xf32>
    %14 = arith.addf %13, %7 : vector<1x256xf32>
    %cst_3 = arith.constant 0.000000e+00 : f32
    %15 = vector.broadcast %cst_3 : f32 to vector<1x256xf32>
    %16 = arith.subf %15, %14 : vector<1x256xf32>
    %17 = arith.mulf %16, %12 : vector<1x256xf32>
    %18 = arith.mulf %17, %8 : vector<1x256xf32>
    %19 = arith.addf %5, %18 : vector<1x256xf32>
    %20 = arith.mulf %17, %9 : vector<1x256xf32>
    %21 = arith.addf %6, %20 : vector<1x256xf32>
    %22 = arith.mulf %17, %10 : vector<1x256xf32>
    %23 = arith.addf %7, %22 : vector<1x256xf32>
    %cst_4 = arith.constant 1.000000e+00 : f32
    %24 = vector.broadcast %cst_4 : f32 to vector<1x256xf32>
    %25 = arith.divf %24, %23 : vector<1x256xf32>
    %cst_5 = arith.constant -2.000000e+00 : f32
    %26 = arith.mulf %cst_5, %2 : f32
    %27 = arith.divf %26, %1 : f32
    %cst_6 = arith.constant -2.000000e+00 : f32
    %28 = arith.mulf %cst_6, %3 : f32
    %29 = arith.divf %28, %0 : f32
    %30 = vector.broadcast %27 : f32 to vector<1x256xf32>
    %31 = arith.mulf %30, %19 : vector<1x256xf32>
    %32 = arith.mulf %31, %25 : vector<1x256xf32>
    %c0_7 = arith.constant 0 : index
    %c0_8 = arith.constant 0 : index
    %33 = vector.load %arg3[%c0_7, %c0_8] : memref<8x256xf32, #tpu.memory_space<vmem>>, vector<1x256xf32>
    tpu.vector_store %arg3[%c0_7, %c0_8], %32 {strides = array<i32>} : memref<8x256xf32, #tpu.memory_space<vmem>>, vector<1x256xf32>,
    %34 = vector.broadcast %29 : f32 to vector<1x256xf32>
    %35 = arith.mulf %34, %21 : vector<1x256xf32>
    %36 = arith.mulf %35, %25 : vector<1x256xf32>
    %c1_9 = arith.constant 1 : index
    %c0_10 = arith.constant 0 : index
    %37 = vector.load %arg3[%c1_9, %c0_10] : memref<8x256xf32, #tpu.memory_space<vmem>>, vector<1x256xf32>
    tpu.vector_store %arg3[%c1_9, %c0_10], %36 {strides = array<i32>} : memref<8x256xf32, #tpu.memory_space<vmem>>, vector<1x256xf32>,
    %cst_11 = arith.constant 2.000000e+00 : f32
    %38 = vector.broadcast %cst_11 : f32 to vector<1x256xf32>
    %39 = arith.mulf %38, %25 : vector<1x256xf32>
    %cst_12 = arith.constant 1.000000e+00 : f32
    %40 = vector.broadcast %cst_12 : f32 to vector<1x256xf32>
    %41 = arith.addf %40, %39 : vector<1x256xf32>
    %c2_13 = arith.constant 2 : index
    %c0_14 = arith.constant 0 : index
    %42 = vector.load %arg3[%c2_13, %c0_14] : memref<8x256xf32, #tpu.memory_space<vmem>>, vector<1x256xf32>
    tpu.vector_store %arg3[%c2_13, %c0_14], %41 {strides = array<i32>} : memref<8x256xf32, #tpu.memory_space<vmem>>, vector<1x256xf32>,
    %43 = arith.mulf %8, %12 : vector<1x256xf32>
    %44 = arith.mulf %19, %25 : vector<1x256xf32>
    %45 = arith.subf %43, %44 : vector<1x256xf32>
    %46 = vector.broadcast %27 : f32 to vector<1x256xf32>
    %47 = arith.mulf %46, %45 : vector<1x256xf32>
    %c3_15 = arith.constant 3 : index
    %c0_16 = arith.constant 0 : index
    %48 = vector.load %arg3[%c3_15, %c0_16] : memref<8x256xf32, #tpu.memory_space<vmem>>, vector<1x256xf32>
    tpu.vector_store %arg3[%c3_15, %c0_16], %47 {strides = array<i32>} : memref<8x256xf32, #tpu.memory_space<vmem>>, vector<1x256xf32>,
    %49 = arith.mulf %9, %12 : vector<1x256xf32>
    %50 = arith.mulf %21, %25 : vector<1x256xf32>
    %51 = arith.subf %49, %50 : vector<1x256xf32>
    %52 = vector.broadcast %29 : f32 to vector<1x256xf32>
    %53 = arith.mulf %52, %51 : vector<1x256xf32>
    %c4 = arith.constant 4 : index
    %c0_17 = arith.constant 0 : index
    %54 = vector.load %arg3[%c4, %c0_17] : memref<8x256xf32, #tpu.memory_space<vmem>>, vector<1x256xf32>
    tpu.vector_store %arg3[%c4, %c0_17], %53 {strides = array<i32>} : memref<8x256xf32, #tpu.memory_space<vmem>>, vector<1x256xf32>,
    %cst_18 = arith.constant -2.000000e+00 : f32
    %55 = vector.broadcast %cst_18 : f32 to vector<1x256xf32>
    %56 = arith.mulf %55, %25 : vector<1x256xf32>
    %c5 = arith.constant 5 : index
    %c0_19 = arith.constant 0 : index
    %57 = vector.load %arg3[%c5, %c0_19] : memref<8x256xf32, #tpu.memory_space<vmem>>, vector<1x256xf32>
    tpu.vector_store %arg3[%c5, %c0_19], %56 {strides = array<i32>} : memref<8x256xf32, #tpu.memory_space<vmem>>, vector<1x256xf32>,
    %cst_20 = arith.constant 0.000000e+00 : f32
    %58 = vector.broadcast %cst_20 : f32 to vector<2x256xf32>
    %c6 = arith.constant 6 : index
    %c0_21 = arith.constant 0 : index
    %59 = vector.load %arg3[%c6, %c0_21] : memref<8x256xf32, #tpu.memory_space<vmem>>, vector<2x256xf32>
    tpu.vector_store %arg3[%c6, %c0_21], %58 {strides = array<i32>} : memref<8x256xf32, #tpu.memory_space<vmem>>, vector<2x256xf32>,
    return
  }
  func.func @transform_0(%arg0: i32) -> i32 {
    %c0_i32 = arith.constant 0 : i32
    %c0_i32_0 = arith.constant 0 : i32
    return %c0_i32 : i32
  }
  func.func @transform_1(%arg0: i32) -> (i32, i32) {
    %c0_i32 = arith.constant 0 : i32
    %c0_i32_0 = arith.constant 0 : i32
    return %c0_i32, %arg0 : i32, i32
  }
  func.func @transform_2(%arg0: i32) -> (i32, i32) {
    %c0_i32 = arith.constant 0 : i32
    %c0_i32_0 = arith.constant 0 : i32
    return %c0_i32, %arg0 : i32, i32
  }
}

</mosaic_0001>

<llo_original>
// kernel: ndc_forward.1
$region0: #{ndc_forward.1}
  #allocation0 [shape = 'u32[]', space=smem, size = 0x4, offset = 0x4, fixed_abs, tag = 'smem constant byte address 0x4 - core index']
  #allocation1 [shape = 'u32[72,128]{1,0:T(1,128)}', space=vmem, size = 0x9000, scoped, tag = 'internal scratch']
  %s0 = inlined_call_operand.vmem [shape: f32[4], index: 0, kind: input, shape index: {}]
  %s1 = inlined_call_operand.vmem [shape: f32[8,256], index: 1, kind: input, shape index: {}]
  %s2 = inlined_call_operand.vmem [shape: f32[8,256], index: 2, kind: output, shape index: {}]
  %s3 = sld [smem:[#allocation0]]
  $region22: #{ndc_forward.1} parent=0
    _
  %s5 = ssub.s32 1, %s3
  %s6 = scalar_select 0, %s5, %s3
  $region1: #{ndc_forward.1} parent=0
    #allocation2 [shape = 'u8[512]{0}', space=smem, size = 0x200, scoped, tag = 'input window, operand 0, single buffered']
    #allocation3 [shape = 's32[1]{0}', space=sflag, size = 0x4, scoped, tag = 'scoped memory for ndc_forward.1']
    %7 = vsyncpa [#allocation3], 0
    // Predicated region
    $region2: #{ndc_forward.1} parent=1 // pred_check
      _
    $region3: #{ndc_forward.1} parent=1 // pred_check_branch
      %9 = sbr.rel (0) target = $region5
    $region4: #{ndc_forward.1} parent=1 // pred_region
      %11 = vsyncadd [#allocation3], 0
      %s13 = sshll.u32 %s0, 4
      %s14 = int_to_ptr.vmem [resolvable:$true] %s13
      %16 = dma.vmem_to_smem %s14, 16, [#allocation2], [#allocation3]
    $region5: #{ndc_forward.1} parent=1 // pred_fallthru
      _
    // Predicated region
    $region6: #{ndc_forward.1} parent=1 // pred_check
      _
    $region7: #{ndc_forward.1} parent=1 // pred_check_branch
      %18 = sbr.rel (0) target = $region9
    $region8: #{ndc_forward.1} parent=1 // pred_region
      _
    $region9: #{ndc_forward.1} parent=1 // pred_fallthru
      _
    // Predicated region
    $region10: #{ndc_forward.1} parent=1 // pred_check
      _
    $region11: #{ndc_forward.1} parent=1 // pred_check_branch
      %20 = sbr.rel (0) target = $region13
    $region12: #{ndc_forward.1} parent=1 // pred_region
      %22 = dma.done [#allocation3], 16
    $region13: #{ndc_forward.1} parent=1 // pred_fallthru
      _
    %23 = sfence
    %s24 = sld [smem:[#allocation2]]
    %s25 = sld [smem:[#allocation2 + $0x1]]
    %s26 = sld [smem:[#allocation2 + $0x2]]
    %s27 = sld [smem:[#allocation2 + $0x3]]
    %v28 = vld [vmem:[%s1] sm:$0xff]
    %v29 = vld [vmem:[%s1 + $0x8] sm:$0xff]
    %v30 = vrcp.pop %v28
    %v31 = vmul.f32 %v28, %v30
    %v32 = vsub.f32 1.0, %v31
    %v33 = vmul.f32 %v30, %v32
    %v34 = vadd.f32 %v30, %v33
    %vm35 = vweird.f32 %v28
    %vm36 = vweird.f32 %v30
    %vm37 = vmor %vm35, %vm36
    %v38 = vsel %vm37, %v30, %v34
    %v39 = vand.u32 2147483647, %v28
    %vm40 = vcmp.eq.f32.partialorder %v39, 8.507059e+37
    %v41 = vand.u32 %v28, 2147483648
    %v42 = vor.u32 1.1754944e-38, %v41
    %v43 = vsel %vm40, %v42, %v38
    %v44 = vmul.f32 1.0, %v43
    %v45 = vrcp.pop %v29
    %v46 = vmul.f32 %v29, %v45
    %v47 = vsub.f32 1.0, %v46
    %v48 = vmul.f32 %v45, %v47
    %v49 = vadd.f32 %v45, %v48
    %vm50 = vweird.f32 %v29
    %vm51 = vweird.f32 %v45
    %vm52 = vmor %vm50, %vm51
    %v53 = vsel %vm52, %v45, %v49
    %v54 = vand.u32 2147483647, %v29
    %vm55 = vcmp.eq.f32.partialorder %v54, 8.507059e+37
    %v56 = vand.u32 %v29, 2147483648
    %v57 = vor.u32 1.1754944e-38, %v56
    %v58 = vsel %vm55, %v57, %v53
    %v59 = vmul.f32 1.0, %v58
    %v60 = vadd.f32 %v28, 1.0
    %v61 = vadd.f32 %v29, 1.0
    %v62 = vsub.f32 0.0, %v60
    %v63 = vsub.f32 0.0, %v61
    %v66 = vrot.slane %v44, 3
    %v67 = vrot.slane %v59, 3
    %v70 = vmul.f32 %v62, %v66
    %v71 = vmul.f32 %v63, %v67
    %v74 = vrot.slane %v28, 1
    %v75 = vrot.slane %v29, 1
    %v78 = vmul.f32 %v70, %v74
    %v79 = vmul.f32 %v71, %v75
    %v82 = vrot.slane %v78, 2
    %v83 = vrot.slane %v79, 2
    %v86 = vadd.f32 %v28, %v82
    %v87 = vadd.f32 %v29, %v83
    %v88 = vrot.slane %v28, 2
    %v89 = vrot.slane %v29, 2
    %v92 = vmul.f32 %v70, %v88
    %v93 = vmul.f32 %v71, %v89
    %v96 = vrot.slane %v92, 1
    %v97 = vrot.slane %v93, 1
    %v100 = vadd.f32 %v28, %v96
    %v101 = vadd.f32 %v29, %v97
    %v102 = vrot.slane %v28, 3
    %v103 = vrot.slane %v29, 3
    %v106 = vmul.f32 %v70, %v102
    %v107 = vmul.f32 %v71, %v103
    %v108 = vadd.f32 %v28, %v106
    %v109 = vadd.f32 %v29, %v107
    %v110 = vrcp.pop %v108
    %v111 = vmul.f32 %v108, %v110
    %v112 = vsub.f32 1.0, %v111
    %v113 = vmul.f32 %v110, %v112
    %v114 = vadd.f32 %v110, %v113
    %vm115 = vweird.f32 %v108
    %vm116 = vweird.f32 %v110
    %vm117 = vmor %vm115, %vm116
    %v118 = vsel %vm117, %v110, %v114
    %v119 = vand.u32 2147483647, %v108
    %vm120 = vcmp.eq.f32.partialorder %v119, 8.507059e+37
    %v121 = vand.u32 %v108, 2147483648
    %v122 = vor.u32 1.1754944e-38, %v121
    %v123 = vsel %vm120, %v122, %v118
    %v124 = vmul.f32 1.0, %v123
    %v125 = vrcp.pop %v109
    %v126 = vmul.f32 %v109, %v125
    %v127 = vsub.f32 1.0, %v126
    %v128 = vmul.f32 %v125, %v127
    %v129 = vadd.f32 %v125, %v128
    %vm130 = vweird.f32 %v109
    %vm131 = vweird.f32 %v125
    %vm132 = vmor %vm130, %vm131
    %v133 = vsel %vm132, %v125, %v129
    %v134 = vand.u32 2147483647, %v109
    %vm135 = vcmp.eq.f32.partialorder %v134, 8.507059e+37
    %v136 = vand.u32 %v109, 2147483648
    %v137 = vor.u32 1.1754944e-38, %v136
    %v138 = vsel %vm135, %v137, %v133
    %v139 = vmul.f32 1.0, %v138
    %s140 = smul.f32 %s26, -2.0
    %v141 = vstv %s25
    %v142 = vrcp.pop %v141
    %v143 = vmul.f32 %v141, %v142
    %v144 = vsub.f32 1.0, %v143
    %v145 = vmul.f32 %v142, %v144
    %v146 = vadd.f32 %v142, %v145
    %vm147 = vweird.f32 %v141
    %vm148 = vweird.f32 %v142
    %vm149 = vmor %vm147, %vm148
    %v150 = vsel %vm149, %v142, %v146
    %v151 = vand.u32 2147483647, %v141
    %vm152 = vcmp.eq.f32.partialorder %v151, 8.507059e+37
    %v153 = vand.u32 %v141, 2147483648
    %v154 = vor.u32 1.1754944e-38, %v153
    %v155 = vsel %vm152, %v154, %v150
    %s156 = vtos %v155
    %s157 = smul.f32 %s140, %s156
    %s158 = smul.f32 %s27, -2.0
    %v159 = vstv %s24
    %v160 = vrcp.pop %v159
    %v161 = vmul.f32 %v159, %v160
    %v162 = vsub.f32 1.0, %v161
    %v163 = vmul.f32 %v160, %v162
    %v164 = vadd.f32 %v160, %v163
    %vm165 = vweird.f32 %v159
    %vm166 = vweird.f32 %v160
    %vm167 = vmor %vm165, %vm166
    %v168 = vsel %vm167, %v160, %v164
    %v169 = vand.u32 2147483647, %v159
    %vm170 = vcmp.eq.f32.partialorder %v169, 8.507059e+37
    %v171 = vand.u32 %v159, 2147483648
    %v172 = vor.u32 1.1754944e-38, %v171
    %v173 = vsel %vm170, %v172, %v168
    %s174 = vtos %v173
    %s175 = smul.f32 %s158, %s174
    %v176 = vstv %s157
    %v177 = vmul.f32 %v176, %v86
    %v178 = vmul.f32 %v176, %v87
    %v181 = vrot.slane %v124, 2
    %v182 = vrot.slane %v139, 2
    %v185 = vmul.f32 %v177, %v181
    %v186 = vmul.f32 %v178, %v182
    %v189 = vrot.slane %v186, 7
    %vm190 = vcmask 1040384
    %v191 = vsel %vm190, %v185, %v189
    %v193 = vlaneseq
    %vm194 = vcmp.ge.s32.totalorder %v193, 0
    %vm195 = vcmp.lt.s32.totalorder %v193, 256
    %vm196 = vmand %vm194, %vm195
    %197 = vst.msk [vmem:[%s2] ss:$8 sm:$0x3] %vm196, %v191
    %198 = vst.msk [vmem:[%s2] ss:$8 sm:$0x0] %vm196, %v191
    %v199 = vstv %s175
    %v200 = vmul.f32 %v199, %v100
    %v201 = vmul.f32 %v199, %v101
    %v202 = vrot.slane %v124, 1
    %v203 = vrot.slane %v139, 1
    %v206 = vmul.f32 %v200, %v202
    %v207 = vmul.f32 %v201, %v203
    %210 = vst [vmem:[#allocation1] sm:$0xff] %v206
    %211 = vst [vmem:[#allocation1 + $0x9] sm:$0xff] %v207
    %s212 = scalar_lea.vmem [#allocation1], 1
    %v213 = vld [vmem:[%s212] ss:$9 sm:$0xff]
    %s215 = scalar_lea.vmem %s2, 1
    %216 = vst.msk [vmem:[%s215] ss:$8 sm:$0x3] %vm196, %v213
    %217 = vst.msk [vmem:[%s215] ss:$8 sm:$0x0] %vm196, %v213
    %v218 = vmul.f32 %v124, 2.0
    %v219 = vmul.f32 %v139, 2.0
    %v220 = vadd.f32 %v218, 1.0
    %v221 = vadd.f32 %v219, 1.0
    %224 = vst [vmem:[#allocation1] sm:$0xff] %v220
    %225 = vst [vmem:[#allocation1 + $0x9] sm:$0xff] %v221
    %s226 = scalar_lea.vmem [#allocation1], 2
    %v227 = vld [vmem:[%s226] ss:$9 sm:$0xff]
    %s229 = scalar_lea.vmem %s2, 2
    %230 = vst.msk [vmem:[%s229] ss:$8 sm:$0x3] %vm196, %v227
    %231 = vst.msk [vmem:[%s229] ss:$8 sm:$0x0] %vm196, %v227
    %v232 = vrot.slane %v44, 2
    %v233 = vrot.slane %v59, 2
    %v236 = vmul.f32 %v28, %v232
    %v237 = vmul.f32 %v29, %v233
    %v238 = vmul.f32 %v86, %v181
    %v239 = vmul.f32 %v87, %v182
    %v242 = vrot.slane %v238, 5
    %v243 = vrot.slane %v239, 5
    %v246 = vsub.f32 %v236, %v242
    %v247 = vsub.f32 %v237, %v243
    %v248 = vmul.f32 %v176, %v246
    %v249 = vmul.f32 %v176, %v247
    %252 = vst [vmem:[#allocation1] sm:$0xff] %v248
    %253 = vst [vmem:[#allocation1 + $0x9] sm:$0xff] %v249
    %s254 = scalar_lea.vmem [#allocation1], 3
    %v255 = vld [vmem:[%s254] ss:$9 sm:$0xff]
    %s257 = scalar_lea.vmem %s2, 3
    %258 = vst.msk [vmem:[%s257] ss:$8 sm:$0x3] %vm196, %v255
    %259 = vst.msk [vmem:[%s257] ss:$8 sm:$0x0] %vm196, %v255
    %v260 = vrot.slane %v44, 1
    %v261 = vrot.slane %v59, 1
    %v264 = vmul.f32 %v28, %v260
    %v265 = vmul.f32 %v29, %v261
    %v266 = vmul.f32 %v100, %v202
    %v267 = vmul.f32 %v101, %v203
    %v270 = vrot.slane %v266, 5
    %v271 = vrot.slane %v267, 5
    %v274 = vsub.f32 %v264, %v270
    %v275 = vsub.f32 %v265, %v271
    %v276 = vmul.f32 %v199, %v274
    %v277 = vmul.f32 %v199, %v275
    %280 = vst [vmem:[#allocation1] sm:$0xff] %v276
    %281 = vst [vmem:[#allocation1 + $0x9] sm:$0xff] %v277
    %s282 = scalar_lea.vmem [#allocation1], 4
    %v283 = vld [vmem:[%s282] ss:$9 sm:$0xff]
    %s285 = scalar_lea.vmem %s2, 4
    %286 = vst.msk [vmem:[%s285] ss:$8 sm:$0x3] %vm196, %v283
    %287 = vst.msk [vmem:[%s285] ss:$8 sm:$0x0] %vm196, %v283
    %v288 = vmul.f32 %v124, -2.0
    %v289 = vmul.f32 %v139, -2.0
    %292 = vst [vmem:[#allocation1] sm:$0xff] %v288
    %293 = vst [vmem:[#allocation1 + $0x9] sm:$0xff] %v289
    %s294 = scalar_lea.vmem [#allocation1], 2
    %v295 = vld [vmem:[%s294] ss:$9 sm:$0xff]
    %s297 = scalar_lea.vmem %s2, 5
    %298 = vst.msk [vmem:[%s297] ss:$8 sm:$0x3] %vm196, %v295
    %299 = vst.msk [vmem:[%s297] ss:$8 sm:$0x0] %vm196, %v295
    %300 = vst [vmem:[%s2] sm:$0xc0] 0.0
    %301 = vst [vmem:[%s2 + $0x8] sm:$0xc0] 0.0
    // Predicated region
    $region14: #{ndc_forward.1} parent=1 // pred_check
      _
    $region15: #{ndc_forward.1} parent=1 // pred_check_branch
      %303 = sbr.rel (0) target = $region17
    $region16: #{ndc_forward.1} parent=1 // pred_region
      _
    $region17: #{ndc_forward.1} parent=1 // pred_fallthru
      _
    // Predicated region
    $region18: #{ndc_forward.1} parent=1 // pred_check
      _
    $region19: #{ndc_forward.1} parent=1 // pred_check_branch
      %305 = sbr.rel (0) target = $region21
    $region20: #{ndc_forward.1} parent=1 // pred_region
      _
    $region21: #{ndc_forward.1} parent=1 // pred_fallthru
      _
    %306 = vsyncpa [#allocation3], 1

</llo_original>
